<compile_context>
chip_gen: v7x
topology: tpu7x:2x2x1
jax: 0.10.0
libtpu: 0.0.40
codegen_flags: <defaults>
</compile_context>

<pallas_src>
import jax
import jax.numpy as jnp
from jax import lax
from jax.experimental import pallas as pl
from jax.experimental.pallas import tpu as pltpu


# ----------------------------------------------------------------------------
# helpers
# ----------------------------------------------------------------------------
def _round_up(x, m):
    return (x + m - 1) // m * m


def _tile(n, cap, quantum):
    """Largest divisor of n that is a multiple of `quantum` and <= cap."""
    cap = min(cap, n)
    d = cap - cap % quantum
    while d >= quantum:
        if n % d == 0:
            return d
        d -= quantum
    # n is always quantum-aligned in this file (padded shapes); guard anyway.
    return quantum if n % quantum == 0 else n


def _vmem_capacity_bytes():
    try:
        return int(pltpu.get_tpu_info().vmem_capacity_bytes)
    except Exception:
        return 64 * 1024 * 1024  # conservative fallback: v7x per-TensorCore VMEM


def _vmem_ceiling():
    """Per-generation usable VMEM: physical capacity minus Mosaic internal-scratch headroom.
    v7x (64 MiB) -> ~56 MiB; v5e/v6e (128 MiB) -> ~112 MiB."""
    cap = _vmem_capacity_bytes()
    return cap - max(cap // 8, 8 * 1024 * 1024)


def _compiler_params(semantics, tile_bytes):
    ceiling = _vmem_ceiling()
    limit = min(max(32 * 1024 * 1024, int(2.5 * tile_bytes)), ceiling)
    return pltpu.CompilerParams(dimension_semantics=semantics,
                                vmem_limit_bytes=limit)


def _pad_gate_cols(w, H, Hp):
    """(..., 4H) -> (..., 4Hp); gate g's columns land 128-aligned at [g*Hp, g*Hp+H)."""
    parts = [w[..., g * H:(g + 1) * H] for g in range(4)]
    pad = [(0, 0)] * (w.ndim - 1) + [(0, Hp - H)]
    return jnp.concatenate([jnp.pad(p, pad) for p in parts], axis=-1)


def _pad_rows(w, rp):
    r = w.shape[0]
    return jnp.pad(w, [(0, rp - r)] + [(0, 0)] * (w.ndim - 1))


def _default_time_chunk(T, Bp, Hp, ceiling):
    """Size the recurrence time chunk so the double-buffered pipeline fits ~half the
    per-generation VMEM ceiling."""
    per_t = Bp * Hp * (2 * 4 * 4 * 2    # gx blocks: 2 dirs x 4Hp x f32 x double-buffer
                       + 2 * 2 * 2      # out blocks: 2 dirs x bf16 x double-buffer
                       + 2 * 4)         # f32 chunk scratch: 2 dirs
    fixed = 2 * Hp * 4 * Hp * 2 + 4 * Bp * Hp * 4   # resident W_hh (bf16) + h/c state (f32)
    budget = ceiling // 2
    cap = max(1, (budget - fixed) // max(per_t, 1))
    cap = min(cap, 64, T)
    tc = 1
    for d in range(1, cap + 1):
        if T % d == 0:
            tc = d
    return tc


# ----------------------------------------------------------------------------
# Pallas kernels
# ----------------------------------------------------------------------------
def proj_single_kernel(x_ref, w_ref, bias_ref, o_ref):
    """o = x @ w + bias.  x:(tn,K) bf16, w:(K,tv) bf16, bias:(1,tv) f32, o:(tn,tv) f32."""
    o_ref[...] = (
        jnp.dot(x_ref[...], w_ref[...], preferred_element_type=jnp.float32)
        + bias_ref[...]
    )


def proj_dual_kernel(a_ref, b_ref, wa_ref, wb_ref, bias_ref, o_ref):
    """o = a @ wa + b @ wb + bias  (replaces concat([fwd, bwd]) @ W).  a,b bf16."""
    acc = jnp.dot(a_ref[...], wa_ref[...], preferred_element_type=jnp.float32)
    acc += jnp.dot(b_ref[...], wb_ref[...], preferred_element_type=jnp.float32)
    o_ref[...] = acc + bias_ref[...]


def bilstm_recurrence_kernel(gxf_ref, gxb_ref, whh_ref, hf_ref, hb_ref,
                             hf_sc, cf_sc, hb_sc, cb_sc, of_sc, ob_sc):
    """One time-chunk of BOTH LSTM directions, interleaved.

    grid = (time_chunk,), sequential ("arbitrary").
    gxf_ref: (tc, Bp, 4Hp) f32  precomputed x@W_ih + b, forward direction, chunk i
    gxb_ref: (tc, Bp, 4Hp) f32  same for backward direction, chunk nc-1-i
    whh_ref: (2, Hp, 4Hp) bf16  recurrent weights (fwd, bwd), resident across the grid
    hf_ref/hb_ref: (tc, Bp, Hp) bf16 hidden-state outputs (forward time order)
    hf_sc/cf_sc/hb_sc/cb_sc: (Bp, Hp) f32 state carried across chunks
    of_sc/ob_sc: (tc, Bp, Hp) f32 per-chunk accumulators (single aligned bf16 writeback)
    """
    tc = gxf_ref.shape[0]
    hp = hf_sc.shape[-1]

    # NOTE: the h/c carry relies on the single time axis executing chunks 0..nc-1
    # sequentially on one core (it is marked "arbitrary"); do not split/reorder it.
    @pl.when(pl.program_id(0) == 0)
    def _init():
        hf_sc[...] = jnp.zeros_like(hf_sc)
        cf_sc[...] = jnp.zeros_like(cf_sc)
        hb_sc[...] = jnp.zeros_like(hb_sc)
        cb_sc[...] = jnp.zeros_like(cb_sc)

    whh_f = whh_ref[0]   # (Hp, 4Hp) bf16, loaded once per chunk
    whh_b = whh_ref[1]

    def cell(gates, c_prev):
        # PyTorch gate order i, f, g, o — each block is 128-aligned (Hp multiple of 128).
        i_g = jax.nn.sigmoid(gates[:, 0 * hp:1 * hp])
        f_g = jax.nn.sigmoid(gates[:, 1 * hp:2 * hp])
        g_g = jnp.tanh(gates[:, 2 * hp:3 * hp])
        o_g = jax.nn.sigmoid(gates[:, 3 * hp:4 * hp])
        c = f_g * c_prev + i_g * g_g
        h = o_g * jnp.tanh(c)
        return h, c

    def step(s, carry):
        # Two independent chains per step: their MXU pushes / EUP ops hide each other.
        tf = s                # forward walks its chunk forward
        tb = tc - 1 - s       # backward walks its (already chunk-reversed) window backward
        gates_f = gxf_ref[tf] + jnp.dot(hf_sc[...].astype(jnp.bfloat16), whh_f,
                                        preferred_element_type=jnp.float32)
        gates_b = gxb_ref[tb] + jnp.dot(hb_sc[...].astype(jnp.bfloat16), whh_b,
                                        preferred_element_type=jnp.float32)
        h_f, c_f = cell(gates_f, cf_sc[...])
        h_b, c_b = cell(gates_b, cb_sc[...])
        hf_sc[...] = h_f
        cf_sc[...] = c_f
        hb_sc[...] = h_b
        cb_sc[...] = c_b
        of_sc[tf] = h_f
        ob_sc[tb] = h_b
        return carry

    # TODO(synk): if a bundle dump shows the per-step W_hh push dominating, stage it on
    # the MXU with pltpu.matmul_push_rhs / matmul_acc_lhs instead of jnp.dot per step.
    lax.fori_loop(0, tc, step, 0, unroll=min(4, tc))

    # Single aligned bf16 writeback of the whole chunk (halves HBM writeback vs f32).
    hf_ref[...] = of_sc[...].astype(hf_ref.dtype)
    hb_ref[...] = ob_sc[...].astype(hb_ref.dtype)


# ----------------------------------------------------------------------------
# pallas_call wrappers
# ----------------------------------------------------------------------------
def run_projection(x, w, bias, *, row_cap=512):
    """x:(N,K) bf16, w:(G,K,D) bf16, bias:(G,1,D) f32 -> (G,N,D) f32."""
    N, K = x.shape
    G, _, D = w.shape
    tn = _tile(N, row_cap, 16)         # 16-row quantum: bf16 sublane packing
    tv = _tile(D, 512, 128)
    grid = (G, N // tn, D // tv)
    tile_bytes = 2 * tn * K + 2 * K * tv + 4 * tv + 4 * tn * tv
    return pl.pallas_call(
        proj_single_kernel,
        out_shape=jax.ShapeDtypeStruct((G, N, D), jnp.float32),
        grid=grid,
        in_specs=[
            pl.BlockSpec((tn, K), lambda g, r, c: (r, 0)),
            pl.BlockSpec((None, K, tv), lambda g, r, c: (g, 0, c)),
            pl.BlockSpec((None, 1, tv), lambda g, r, c: (g, 0, c)),
        ],
        out_specs=pl.BlockSpec((None, tn, tv), lambda g, r, c: (g, r, c)),
        compiler_params=_compiler_params(("parallel", "parallel", "parallel"),
                                         tile_bytes),
        cost_estimate=pl.CostEstimate(
            flops=int(2 * G * N * K * D), transcendentals=0,
            bytes_accessed=int(2 * N * K + 2 * G * K * D + 4 * G * N * D)),
    )(x, w, bias)


def run_dual_projection(a, b, wa, wb, bias, *, row_cap=512):
    """a,b:(N,K) bf16, wa,wb:(G,K,D) bf16, bias:(G,1,D) f32 -> (G,N,D) f32."""
    N, K = a.shape
    G, _, D = wa.shape
    tn = _tile(N, row_cap, 16)
    tv = _tile(D, 512, 128)
    grid = (G, N // tn, D // tv)
    tile_bytes = 2 * 2 * tn * K + 2 * 2 * K * tv + 4 * tv + 4 * tn * tv
    return pl.pallas_call(
        proj_dual_kernel,
        out_shape=jax.ShapeDtypeStruct((G, N, D), jnp.float32),
        grid=grid,
        in_specs=[
            pl.BlockSpec((tn, K), lambda g, r, c: (r, 0)),
            pl.BlockSpec((tn, K), lambda g, r, c: (r, 0)),
            pl.BlockSpec((None, K, tv), lambda g, r, c: (g, 0, c)),
            pl.BlockSpec((None, K, tv), lambda g, r, c: (g, 0, c)),
            pl.BlockSpec((None, 1, tv), lambda g, r, c: (g, 0, c)),
        ],
        out_specs=pl.BlockSpec((None, tn, tv), lambda g, r, c: (g, r, c)),
        compiler_params=_compiler_params(("parallel", "parallel", "parallel"),
                                         tile_bytes),
        cost_estimate=pl.CostEstimate(
            flops=int(4 * G * N * K * D), transcendentals=0,
            bytes_accessed=int(2 * 2 * N * K + 2 * 2 * G * K * D + 4 * G * N * D)),
    )(a, b, wa, wb, bias)


def run_bilstm_recurrence(gx, whh, *, time_chunk=None):
    """gx:(2,T,Bp,4Hp) f32, whh:(2,Hp,4Hp) bf16 -> (hf, hb) each (T,Bp,Hp) bf16."""
    _, T, Bp, H4 = gx.shape
    Hp = H4 // 4
    ceiling = _vmem_ceiling()
    tc = time_chunk if time_chunk is not None else _default_time_chunk(T, Bp, Hp, ceiling)
    assert T % tc == 0, (T, tc)
    nc = T // tc

    tile_bytes = (2 * 4 * tc * Bp * H4       # two gx blocks, f32
                  + 2 * 2 * tc * Bp * Hp     # two output blocks, bf16
                  + 2 * Hp * H4              # W_hh (both dirs), bf16, resident
                  + 2 * 4 * tc * Bp * Hp     # f32 chunk scratch
                  + 4 * 4 * Bp * Hp)         # h/c state scratch, f32
    out_sds = jax.ShapeDtypeStruct((T, Bp, Hp), jnp.bfloat16)
    return pl.pallas_call(
        bilstm_recurrence_kernel,
        out_shape=(out_sds, out_sds),
        grid=(nc,),
        in_specs=[
            # forward direction: chunk i (forward time order)
            pl.BlockSpec((None, tc, Bp, H4), lambda i: (0, i, 0, 0)),
            # backward direction: chunk nc-1-i (chunk reversal folded into the index_map)
            pl.BlockSpec((None, tc, Bp, H4), lambda i: (1, nc - 1 - i, 0, 0)),
            pl.BlockSpec((2, Hp, H4), lambda i: (0, 0, 0)),
        ],
        out_specs=(
            pl.BlockSpec((tc, Bp, Hp), lambda i: (i, 0, 0)),
            pl.BlockSpec((tc, Bp, Hp), lambda i: (nc - 1 - i, 0, 0)),
        ),
        scratch_shapes=[
            pltpu.VMEM((Bp, Hp), jnp.float32),       # h fwd
            pltpu.VMEM((Bp, Hp), jnp.float32),       # c fwd
            pltpu.VMEM((Bp, Hp), jnp.float32),       # h bwd
            pltpu.VMEM((Bp, Hp), jnp.float32),       # c bwd
            pltpu.VMEM((tc, Bp, Hp), jnp.float32),   # fwd chunk accumulator
            pltpu.VMEM((tc, Bp, Hp), jnp.float32),   # bwd chunk accumulator
        ],
        compiler_params=_compiler_params(("arbitrary",), tile_bytes),
        cost_estimate=pl.CostEstimate(
            flops=int(2 * 2 * T * Bp * Hp * H4),
            transcendentals=int(5 * 2 * T * Bp * Hp),   # 3 sigmoid + 2 tanh per cell
            bytes_accessed=int(gx.size * 4 + whh.size * 2 + 2 * T * Bp * Hp * 2)),
    )(gx, gx, whh)


# ----------------------------------------------------------------------------
# parameter construction / packing
# ----------------------------------------------------------------------------
def make_params(key, vocab_size, embedding_size, hidden_size):
    """Logical (PyTorch-equivalent, already transposed) parameters, f32."""
    keys = jax.random.split(key, 16)
    k = iter(keys)

    def u(kk, shape, scale=0.1):
        return jax.random.uniform(kk, shape, jnp.float32, -scale, scale)

    H, E, V = hidden_size, embedding_size, vocab_size

    def lstm_params(d_in):
        return {
            "w_ih_f": u(next(k), (d_in, 4 * H)),
            "w_hh_f": u(next(k), (H, 4 * H)),
            "b_f": u(next(k), (1, 4 * H)),        # bias_ih + bias_hh fused
            "w_ih_b": u(next(k), (d_in, 4 * H)),
            "w_hh_b": u(next(k), (H, 4 * H)),
            "b_b": u(next(k), (1, 4 * H)),
        }

    return {
        "embeddings": u(next(k), (V, E), scale=1.0),
        "lstm1": lstm_params(E),
        "lstm2": lstm_params(2 * H),
        "lin_w_t": u(next(k), (2 * H, V)),
        "lin_b": u(next(k), (1, V)),
    }


def prepare_params(params, hidden_size, embedding_size, vocab_size):
    """Pad to lane/sublane-aligned shapes, split layer-2/linear weights per direction,
    stack the two directions, and cast matmul operands (weights + embedding table) to bf16."""
    H, E, V = hidden_size, embedding_size, vocab_size
    Hp, Ep, Vp = _round_up(H, 128), _round_up(E, 128), _round_up(V, 128)

    def pad_wih(w, din_p):   # (Din,4H) -> (din_p, 4Hp) bf16
        return _pad_rows(_pad_gate_cols(w, H, Hp), din_p).astype(jnp.bfloat16)

    def pad_whh(w):          # (H,4H) -> (Hp, 4Hp) bf16
        return _pad_rows(_pad_gate_cols(w, H, Hp), Hp).astype(jnp.bfloat16)

    def pad_b(b):            # (1,4H) -> (1, 4Hp) f32
        return _pad_gate_cols(b, H, Hp).astype(jnp.float32)

    l1, l2 = params["lstm1"], params["lstm2"]
    lin_w, lin_b = params["lin_w_t"], params["lin_b"]

    def pad_lin(w):          # (H,V) -> (Hp, Vp) bf16
        return _pad_rows(jnp.pad(w, ((0, 0), (0, Vp - V))), Hp).astype(jnp.bfloat16)

    return {
        "H": H, "E": E, "V": V, "Hp": Hp, "Ep": Ep, "Vp": Vp,
        # bf16 embedding table: halves the gathered-slab HBM traffic; matches the bf16
        # precision the first matmul uses anyway.
        "emb": jnp.pad(params["embeddings"], ((0, 0), (0, Ep - E))).astype(jnp.bfloat16),
        # layer 1 (input = embeddings)
        "l1_wih": jnp.stack([pad_wih(l1["w_ih_f"], Ep), pad_wih(l1["w_ih_b"], Ep)]),
        "l1_b": jnp.stack([pad_b(l1["b_f"]), pad_b(l1["b_b"])]),
        "l1_whh": jnp.stack([pad_whh(l1["w_hh_f"]), pad_whh(l1["w_hh_b"])]),
        # layer 2 (input = [fwd | bwd] of layer 1, consumed through split weight halves)
        "l2_wtop": jnp.stack([pad_wih(l2["w_ih_f"][:H], Hp), pad_wih(l2["w_ih_b"][:H], Hp)]),
        "l2_wbot": jnp.stack([pad_wih(l2["w_ih_f"][H:], Hp), pad_wih(l2["w_ih_b"][H:], Hp)]),
        "l2_b": jnp.stack([pad_b(l2["b_f"]), pad_b(l2["b_b"])]),
        "l2_whh": jnp.stack([pad_whh(l2["w_hh_f"]), pad_whh(l2["w_hh_b"])]),
        # output linear (also consumes fwd/bwd halves without a concat)
        # TODO(synk): on v7x these could be fp8 with per-column scales to halve the
        # dominant weight stream of the output layer.
        "lin_wtop": pad_lin(lin_w[:H])[None],
        "lin_wbot": pad_lin(lin_w[H:])[None],
        "lin_b": jnp.pad(lin_b, ((0, 0), (0, Vp - V))).astype(jnp.float32)[None],
    }


# ----------------------------------------------------------------------------
# forward pass
# ----------------------------------------------------------------------------
def elmo_forward(X, kp, *, time_chunk=None):
    """X: (B, T) int32 token ids -> (B, vocab, T) logits (matches PyTorch)."""
    B, T = X.shape
    H, V = kp["H"], kp["V"]
    Hp, Ep, Vp = kp["Hp"], kp["Ep"], kp["Vp"]
    Bp = _round_up(B, 16)   # 16 = bf16 sublane quantum -> all bf16 row tiles are packing-aligned
    N = T * Bp

    # Embedding lookup (bf16), time-major, batch padded (glue gather).
    # TODO(synk): fuse the gather into the layer-1 projection via PrefetchScalarGridSpec
    # (token ids as scalar prefetch + pl.Element row gather) to avoid materializing the slab.
    emb = jnp.take(kp["emb"], X.T, axis=0)                 # (T, B, Ep) bf16
    emb = jnp.pad(emb, ((0, 0), (0, Bp - B), (0, 0)))      # (T, Bp, Ep)
    x0 = emb.reshape(N, Ep)

    # ---- layer 1 ----  x@W_ih + b hoisted out of the recurrence as one large MXU matmul.
    gx1 = run_projection(x0, kp["l1_wih"], kp["l1_b"])     # (2, N, 4Hp) f32
    gx1 = gx1.reshape(2, T, Bp, 4 * Hp)
    h1f, h1b = run_bilstm_recurrence(gx1, kp["l1_whh"], time_chunk=time_chunk)  # (T,Bp,Hp) bf16 x2
    h1f = h1f.reshape(N, Hp)
    h1b = h1b.reshape(N, Hp)

    # ---- layer 2 ----  (no concat: split input-weight halves, bf16 activations)
    gx2 = run_dual_projection(h1f, h1b, kp["l2_wtop"], kp["l2_wbot"], kp["l2_b"])
    gx2 = gx2.reshape(2, T, Bp, 4 * Hp)
    h2f, h2b = run_bilstm_recurrence(gx2, kp["l2_whh"], time_chunk=time_chunk)
    h2f = h2f.reshape(N, Hp)
    h2b = h2b.reshape(N, Hp)

    # Dropout is identity at inference.
    # TODO(synk): training-mode dropout (random mask + scaling) not implemented.

    # ---- output linear ----  big row tile: this layer is weight-traffic bound, so
    # re-stream the (Hp, Vp) weight panels as few times as possible.
    logits = run_dual_projection(h2f, h2b, kp["lin_wtop"], kp["lin_wbot"], kp["lin_b"],
                                 row_cap=2048)
    logits = logits.reshape(T, Bp, Vp)[:, :B, :V]          # strip padding -> (T, B, V)

    # (T, B, V) -> (B, V, T), matching torch.transpose(output, 1, 2).
    # TODO(synk): fold the (B, V, T) layout into the linear's out_spec (per-batch in-kernel
    # transpose) to drop this extra HBM pass; lane-sparse for small T, so left to XLA here.
    return jnp.transpose(logits, (1, 2, 0))


# ----------------------------------------------------------------------------
# Pure-JAX reference (bf16 matmul operands, f32 accumulate — matches kernel math)
# ----------------------------------------------------------------------------
def _mm(a, w):
    return jnp.dot(a.astype(jnp.bfloat16), w.astype(jnp.bfloat16),
                   preferred_element_type=jnp.float32)


def _ref_lstm_dir(x_tm, w_ih, w_hh, b):
    T, B, _ = x_tm.shape
    H = w_hh.shape[0]

    def step(carry, x_t):
        h, c = carry
        gates = _mm(x_t, w_ih) + _mm(h, w_hh) + b
        i = jax.nn.sigmoid(gates[:, 0 * H:1 * H])
        f = jax.nn.sigmoid(gates[:, 1 * H:2 * H])
        g = jnp.tanh(gates[:, 2 * H:3 * H])
        o = jax.nn.sigmoid(gates[:, 3 * H:4 * H])
        c = f * c + i * g
        h = o * jnp.tanh(c)
        return (h, c), h

    init = (jnp.zeros((B, H), jnp.float32), jnp.zeros((B, H), jnp.float32))
    _, hs = lax.scan(step, init, x_tm)
    return hs


def elmo_reference(X, params):
    emb = jnp.take(params["embeddings"], X, axis=0)

    def bilstm(x_bt, p):
        x_tm = jnp.transpose(x_bt, (1, 0, 2))
        fwd = _ref_lstm_dir(x_tm, p["w_ih_f"], p["w_hh_f"], p["b_f"])
        bwd = _ref_lstm_dir(x_tm[::-1], p["w_ih_b"], p["w_hh_b"], p["b_b"])[::-1]
        return jnp.transpose(jnp.concatenate([fwd, bwd], axis=-1), (1, 0, 2))

    l1 = bilstm(emb, params["lstm1"])
    l2 = bilstm(l1, params["lstm2"])
    logits = _mm(l2, params["lin_w_t"]) + params["lin_b"]
    return jnp.transpose(logits, (0, 2, 1))


# ----------------------------------------------------------------------------
if __name__ == "__main__":
    vocab_size = 32
    embedding_size = 32
    hidden_size = 32
    batch = 2
    seq_len = 8

    key = jax.random.PRNGKey(0)
    k_param, k_data = jax.random.split(key)
    params = make_params(k_param, vocab_size, embedding_size, hidden_size)
    kparams = prepare_params(params, hidden_size, embedding_size, vocab_size)
    X = jax.random.randint(k_data, (batch, seq_len), 0, vocab_size, dtype=jnp.int32)

    # time_chunk=4 -> a 2-chunk time grid, exercising the cross-chunk state carry
    # and the backward-direction chunk reversal.
    out = elmo_forward(X, kparams, time_chunk=4)
    out = jax.block_until_ready(out)
    assert out.shape == (batch, vocab_size, seq_len), out.shape

    ref = jax.block_until_ready(elmo_reference(X, params))
    if not jnp.allclose(out, ref, atol=2e-2, rtol=2e-2):
        err = float(jnp.max(jnp.abs(out - ref)))
        raise AssertionError(f"Pallas ELMo output mismatch vs JAX reference (max abs err {err:.3e})")

    print("KERNEL_OK")
</pallas_src>

<mosaic_0001>
module attributes {stable_mosaic.version = 11 : i64} {
  func.func @proj_single_kernel(%arg0: i32, %arg1: i32, %arg2: i32, %arg3: memref<128x128xbf16, #tpu.memory_space<vmem>>, %arg4: memref<1x128x512xbf16, #tpu.memory_space<vmem>>, %arg5: memref<1x1x512xf32, #tpu.memory_space<vmem>>, %arg6: memref<1x128x512xf32, #tpu.memory_space<vmem>>) attributes {dimension_semantics = [#tpu.dimension_semantics<parallel>, #tpu.dimension_semantics<parallel>, #tpu.dimension_semantics<parallel>], iteration_bounds = array<i64: 2, 1, 1>, scalar_prefetch = 0 : i64, scratch_operands = 0 : i64, tpu.core_type = #tpu.core_type<tc>, window_params = [{transform_indices = @transform_0, window_bounds = array<i64: 128, 128>}, {transform_indices = @transform_1, window_bounds = array<i64: 1, 128, 512>}, {transform_indices = @transform_2, window_bounds = array<i64: 1, 1, 512>}, {transform_indices = @transform_3, window_bounds = array<i64: 1, 128, 512>}]} {
    %c0 = arith.constant 0 : index
    %c0_0 = arith.constant 0 : index
    %0 = vector.load %arg3[%c0, %c0_0] : memref<128x128xbf16, #tpu.memory_space<vmem>>, vector<128x128xbf16>
    %c0_1 = arith.constant 0 : index
    %c0_2 = arith.constant 0 : index
    %c0_3 = arith.constant 0 : index
    %1 = vector.load %arg4[%c0_1, %c0_2, %c0_3] : memref<1x128x512xbf16, #tpu.memory_space<vmem>>, vector<1x128x512xbf16>
    %2 = vector.shape_cast %1 : vector<1x128x512xbf16> to vector<128x512xbf16>
    %cst = arith.constant dense<0.000000e+00> : vector<128x512xf32>
    %3 = tpu.matmul %0, %2, %cst {dimension_numbers = #tpu.dot_dimension_numbers<[1], [0], [0], [1], [0, 0, 1, 1], [], []>} : vector<128x128xbf16>, vector<128x512xbf16>, vector<128x512xf32> -> vector<128x512xf32>
    %c0_4 = arith.constant 0 : index
    %c0_5 = arith.constant 0 : index
    %c0_6 = arith.constant 0 : index
    %4 = vector.load %arg5[%c0_4, %c0_5, %c0_6] : memref<1x1x512xf32, #tpu.memory_space<vmem>>, vector<1x1x512xf32>
    %5 = vector.shape_cast %4 : vector<1x1x512xf32> to vector<1x512xf32>
    %6 = vector.broadcast %5 : vector<1x512xf32> to vector<128x512xf32>
    %7 = arith.addf %3, %6 : vector<128x512xf32>
    %c0_7 = arith.constant 0 : index
    %c0_8 = arith.constant 0 : index
    %c0_9 = arith.constant 0 : index
    %8 = vector.load %arg6[%c0_7, %c0_8, %c0_9] : memref<1x128x512xf32, #tpu.memory_space<vmem>>, vector<1x128x512xf32>
    %9 = vector.shape_cast %8 : vector<1x128x512xf32> to vector<128x512xf32>
    %10 = vector.shape_cast %7 : vector<128x512xf32> to vector<1x128x512xf32>
    tpu.vector_store %arg6[%c0_7, %c0_8, %c0_9], %10 {strides = array<i32>} : memref<1x128x512xf32, #tpu.memory_space<vmem>>, vector<1x128x512xf32>,
    return
  }
  func.func @transform_0(%arg0: i32, %arg1: i32, %arg2: i32) -> (i32, i32) {
    %c0_i32 = arith.constant 0 : i32
    %c0_i32_0 = arith.constant 0 : i32
    return %arg1, %c0_i32 : i32, i32
  }
  func.func @transform_1(%arg0: i32, %arg1: i32, %arg2: i32) -> (i32, i32, i32) {
    %c0_i32 = arith.constant 0 : i32
    %c0_i32_0 = arith.constant 0 : i32
    return %arg0, %c0_i32, %arg2 : i32, i32, i32
  }
  func.func @transform_2(%arg0: i32, %arg1: i32, %arg2: i32) -> (i32, i32, i32) {
    %c0_i32 = arith.constant 0 : i32
    %c0_i32_0 = arith.constant 0 : i32
    return %arg0, %c0_i32, %arg2 : i32, i32, i32
  }
  func.func @transform_3(%arg0: i32, %arg1: i32, %arg2: i32) -> (i32, i32, i32) {
    %c0_i32 = arith.constant 0 : i32
    return %arg0, %arg1, %arg2 : i32, i32, i32
  }
}

</mosaic_0001>

<llo_original>
// kernel: tpu_custom_call.1
$region0: #{tpu_custom_call.1}
  #allocation0 [shape = 'u32[]', space=smem, size = 0x4, offset = 0x4, fixed_abs, tag = 'smem constant byte address 0x4 - core index']
  #allocation1 [shape = 'u32[144,128]{1,0:T(1,128)}', space=vmem, size = 0x12000, scoped, tag = 'internal scratch']
  %s0 = inlined_call_operand.hbm [shape: bf16[128,128], index: 0, kind: input, shape index: {}]
  %s1 = inlined_call_operand.hbm [shape: bf16[2,128,512], index: 1, kind: input, shape index: {}]
  %s2 = inlined_call_operand.hbm [shape: f32[2,1,512], index: 2, kind: input, shape index: {}]
  %s3 = inlined_call_operand.hbm [shape: f32[2,128,512], index: 3, kind: output, shape index: {}]
  %s4 = sld [smem:[#allocation0]]
  $region57: #{tpu_custom_call.1} parent=0
    _
  %s6 = ssub.s32 1, %s4
  %s7 = scalar_select 0, %s6, %s4
  $region1: #{tpu_custom_call.1} parent=0
    #allocation2 [shape = 'u8[32768]{0}', space=vmem, size = 0x8000, scoped, tag = 'input window, operand 0, single buffered']
    #allocation3 [shape = 's32[2]{0}', space=sflag, size = 0x8, scoped, tag = 'scoped memory for tpu_custom_call.1']
    #allocation4 [shape = 's32[2]{0}', space=sflag, size = 0x8, scoped, tag = 'scoped memory for tpu_custom_call.1']
    #allocation5 [shape = 'u8[262144]{0}', space=vmem, size = 0x40000, scoped, tag = 'input window, operand 1']
    #allocation6 [shape = 's32[2]{0}', space=sflag, size = 0x8, scoped, tag = 'scoped memory for tpu_custom_call.1']
    #allocation7 [shape = 'u8[4096]{0}', space=vmem, size = 0x1000, scoped, tag = 'input window, operand 2']
    #allocation8 [shape = 'u8[524288]{0}', space=vmem, size = 0x80000, scoped, tag = 'output window, operand 0']
    %8 = vsyncpa [#allocation3], 0
    %9 = vsyncpa [#allocation6], 0
    %s10 = scalar_lea.sflag [#allocation6], 1
    %11 = vsyncpa %s10, 0
    %12 = vsyncpa [#allocation4], 0
    %s13 = scalar_lea.sflag [#allocation4], 1
    %14 = vsyncpa %s13, 0
    loop: start=0, step=1, limit=4
    $region2: #{tpu_custom_call.1} parent=1 // loop_pre_header
      _
    $region3: #{tpu_custom_call.1} parent=1 // loop_header
      %s16 = sphi 0, %s20
      %p17 = scmp.ge.s32.totalorder %s16, 4
      %s23 = sphi 0, %s42
      %s24 = sphi 0, %s38
      %s25 = sphi 0, %s34
      %s26 = sphi 0, %s23
      %s27 = sphi 0, %s24
      %s28 = sphi 0, %s25
      %s29 = sphi 0, %s26
      %s30 = sphi 0, %s27
      %s31 = sphi 0, %s28
      %s45 = sphi 0, %s47
      %s48 = sphi 0, %s45
      %s49 = sphi 0, %s48
      %s65 = sphi 0, %s49
      %s73 = sphi 0, %s75
      %s76 = sphi 0, %s73
      %s77 = sphi 0, %s76
      %s93 = sphi 0, %s77
      %s101 = sphi 0, %s103
      %s104 = sphi 0, %s101
      %s105 = sphi 0, %s104
      %s121 = sphi 0, %s105
      %s131 = sphi 0, %s133
      %s134 = sphi 0, %s131
      %s135 = sphi 0, %s134
      %s151 = sphi 0, %s135
    $region4: #{tpu_custom_call.1} parent=1 // loop_header_branch
      %19 = sbr.rel (%p17) target = $region8
    $region5: #{tpu_custom_call.1} parent=1 // loop_body
      %s21 = ssub.s32 %s16, 1
      %s22 = ssub.s32 %s16, 2
      %s32 = sadd.s32 1, %s25
      %p33 = scmp.ge.s32.totalorder %s32, 1
      %s34 = scalar_select %p33, 0, %s32
      %s35 = sadd.s32 1, %s24
      %s36 = scalar_select %p33, %s35, %s24
      %p37 = scmp.ge.s32.totalorder %s36, 1
      %s38 = scalar_select %p37, 0, %s36
      %s39 = sadd.s32 1, %s23
      %s40 = scalar_select %p37, %s39, %s23
      %p41 = scmp.ge.s32.totalorder %s40, 2
      %s42 = scalar_select %p41, 0, %s40
      %s43 = ssub.s32 %s24, %s38
      %p44 = scmp.eq.s32.totalorder %s43, 0
      %s46 = sadd.s32 %s45, 1
      %s47 = scalar_select %p44, %s45, %s46
      %p50 = pneg %p44
      %p51 = scmp.eq.s32.totalorder %s16, 1
      %p52 = por %p50, %p51
      %p53 = scmp.ne.s32.totalorder %s45, %s48
      %p54 = scmp.eq.s32.totalorder %s16, 0
      %p55 = por %p53, %p54
      %p56 = scmp.ne.s32.totalorder %s45, %s48
      %p57 = scmp.eq.s32.totalorder %s21, 1
      %p58 = por %p56, %p57
      %p59 = scmp.ne.s32.totalorder %s48, %s49
      %p60 = scmp.eq.s32.totalorder %s21, 0
      %p61 = por %p59, %p60
      %p62 = scmp.ne.s32.totalorder %s48, %s49
      %p63 = scmp.eq.s32.totalorder %s22, 1
      %p64 = por %p62, %p63
      %p66 = scmp.ne.s32.totalorder %s49, %s65
      %p67 = scmp.eq.s32.totalorder %s22, 0
      %p68 = por %p66, %p67
      %s69 = ssub.s32 %s23, %s42
      %s70 = ssub.s32 %s25, %s34
      %s71 = sor.u32 %s69, %s70
      %p72 = scmp.eq.s32.totalorder %s71, 0
      %s74 = sadd.s32 %s73, 1
      %s75 = scalar_select %p72, %s73, %s74
      %p78 = pneg %p72
      %p79 = scmp.eq.s32.totalorder %s16, 1
      %p80 = por %p78, %p79
      %p81 = scmp.ne.s32.totalorder %s73, %s76
      %p82 = scmp.eq.s32.totalorder %s16, 0
      %p83 = por %p81, %p82
      %p84 = scmp.ne.s32.totalorder %s73, %s76
      %p85 = scmp.eq.s32.totalorder %s21, 1
      %p86 = por %p84, %p85
      %p87 = scmp.ne.s32.totalorder %s76, %s77
      %p88 = scmp.eq.s32.totalorder %s21, 0
      %p89 = por %p87, %p88
      %p90 = scmp.ne.s32.totalorder %s76, %s77
      %p91 = scmp.eq.s32.totalorder %s22, 1
      %p92 = por %p90, %p91
      %p94 = scmp.ne.s32.totalorder %s77, %s93
      %p95 = scmp.eq.s32.totalorder %s22, 0
      %p96 = por %p94, %p95
      %s97 = ssub.s32 %s23, %s42
      %s98 = ssub.s32 %s25, %s34
      %s99 = sor.u32 %s97, %s98
      %p100 = scmp.eq.s32.totalorder %s99, 0
      %s102 = sadd.s32 %s101, 1
      %s103 = scalar_select %p100, %s101, %s102
      %p106 = pneg %p100
      %p107 = scmp.eq.s32.totalorder %s16, 1
      %p108 = por %p106, %p107
      %p109 = scmp.ne.s32.totalorder %s101, %s104
      %p110 = scmp.eq.s32.totalorder %s16, 0
      %p111 = por %p109, %p110
      %p112 = scmp.ne.s32.totalorder %s101, %s104
      %p113 = scmp.eq.s32.totalorder %s21, 1
      %p114 = por %p112, %p113
      %p115 = scmp.ne.s32.totalorder %s104, %s105
      %p116 = scmp.eq.s32.totalorder %s21, 0
      %p117 = por %p115, %p116
      %p118 = scmp.ne.s32.totalorder %s104, %s105
      %p119 = scmp.eq.s32.totalorder %s22, 1
      %p120 = por %p118, %p119
      %p122 = scmp.ne.s32.totalorder %s105, %s121
      %p123 = scmp.eq.s32.totalorder %s22, 0
      %p124 = por %p122, %p123
      %s125 = ssub.s32 %s23, %s42
      %s126 = ssub.s32 %s24, %s38
      %s127 = sor.u32 %s125, %s126
      %s128 = ssub.s32 %s25, %s34
      %s129 = sor.u32 %s127, %s128
      %p130 = scmp.eq.s32.totalorder %s129, 0
      %s132 = sadd.s32 %s131, 1
      %s133 = scalar_select %p130, %s131, %s132
      %p136 = pneg %p130
      %p137 = scmp.eq.s32.totalorder %s16, 1
      %p138 = por %p136, %p137
      %p139 = scmp.ne.s32.totalorder %s131, %s134
      %p140 = scmp.eq.s32.totalorder %s16, 0
      %p141 = por %p139, %p140
      %p142 = scmp.ne.s32.totalorder %s131, %s134
      %p143 = scmp.eq.s32.totalorder %s21, 1
      %p144 = por %p142, %p143
      %p145 = scmp.ne.s32.totalorder %s134, %s135
      %p146 = scmp.eq.s32.totalorder %s21, 0
      %p147 = por %p145, %p146
      %p148 = scmp.ne.s32.totalorder %s134, %s135
      %p149 = scmp.eq.s32.totalorder %s22, 1
      %p150 = por %p148, %p149
      %p152 = scmp.ne.s32.totalorder %s135, %s151
      %p153 = scmp.eq.s32.totalorder %s22, 0
      %p154 = por %p152, %p153
      %p155 = scmp.le.s32.totalorder 1, %s16
      %p156 = scmp.lt.s32.totalorder %s16, 3
      %p157 = pnand %p155, %p156
      %p158 = pneg %p157
      // Predicated region
      $region9: #{tpu_custom_call.1} parent=5 // pred_check
        _
      $region10: #{tpu_custom_call.1} parent=5 // pred_check_branch
        %160 = sbr.rel (%p157) target = $region12
      $region11: #{tpu_custom_call.1} parent=5 // pred_region
        %s161 = ssub.s32 %s16, 1
        // Predicated region
        $region13: #{tpu_custom_call.1} parent=11 // pred_check
          %p162 = pneg %p61
        $region14: #{tpu_custom_call.1} parent=11 // pred_check_branch
          %164 = sbr.rel (%p162) target = $region16
        $region15: #{tpu_custom_call.1} parent=11 // pred_region
          %s165 = smul.u32 16, %s27
          %s167 = ssub.s32 1024, 1024
          %168 = vsyncadd [#allocation3], %s167
          %s169 = smul.addr %s165, 64
          %s170 = scalar_lea.hbm %s0, %s169
          %s171 = sshll.u32 [#allocation2], 4
          %s172 = int_to_ptr.vmem [resolvable:$true] %s171
          %177 = dma.hbm_to_vmem [thread:$0]  %s170, 1024, %s172, [#allocation3], 64, 64, 4
        $region16: #{tpu_custom_call.1} parent=11 // pred_fallthru
          _
      $region12: #{tpu_custom_call.1} parent=5 // pred_fallthru
        _
      %p178 = scmp.lt.s32.totalorder %s16, 2
      // Predicated region
      $region17: #{tpu_custom_call.1} parent=5 // pred_check
        %p179 = pneg %p178
      $region18: #{tpu_custom_call.1} parent=5 // pred_check_branch
        %181 = sbr.rel (%p179) target = $region20
      $region19: #{tpu_custom_call.1} parent=5 // pred_region
        // Predicated region
        $region21: #{tpu_custom_call.1} parent=19 // pred_check
          %p182 = pneg %p83
        $region22: #{tpu_custom_call.1} parent=19 // pred_check_branch
          %184 = sbr.rel (%p182) target = $region24
        $region23: #{tpu_custom_call.1} parent=19 // pred_region
          %s185 = sand.u32 %s16, 1
          %s186 = scalar_lea.sflag [#allocation6], %s185
          %s187 = sand.u32 %s73, 1
          %s188 = smul.addr %s187, 256
          %s189 = scalar_lea.vmem [#allocation5], %s188
          %s190 = smul.u32 4, %s25
          %s192 = ssub.s32 4096, 4096
          %193 = vsyncadd %s186, %s192
          %s194 = smul.addr %s23, 64
          %s195 = sadd.s32 %s190, %s194
          %s196 = smul.addr %s195, 64
          %s197 = scalar_lea.hbm %s1, %s196
          %s198 = sshll.u32 %s189, 4
          %s199 = int_to_ptr.vmem [resolvable:$true] %s198
          %204 = dma.hbm_to_vmem [thread:$0]  %s197, 4096, %s199, %s186, 256, 256, 16
        $region24: #{tpu_custom_call.1} parent=19 // pred_fallthru
          _
        // Predicated region
        $region25: #{tpu_custom_call.1} parent=19 // pred_check
          %p205 = pneg %p111
        $region26: #{tpu_custom_call.1} parent=19 // pred_check_branch
          %207 = sbr.rel (%p205) target = $region28
        $region27: #{tpu_custom_call.1} parent=19 // pred_region
          %s208 = sand.u32 %s16, 1
          %s209 = scalar_lea.sflag [#allocation6], %s208
          %s210 = sand.u32 %s101, 1
          %s211 = smul.addr %s210, 4
          %s212 = scalar_lea.vmem [#allocation7], %s211
          %s213 = smul.u32 4, %s25
          %s215 = ssub.s32 64, 64
          %216 = vsyncadd %s209, %s215
          %s217 = smul.addr %s23, 4
          %s218 = sadd.s32 %s213, %s217
          %s219 = smul.addr %s218, 16
          %s220 = scalar_lea.hbm %s2, %s219
          %s222 = sshll.u32 %s212, 4
          %s223 = int_to_ptr.vmem [resolvable:$true] %s222
          %225 = dma.hbm_to_vmem [thread:$0]  %s220, 64, %s223, %s209
        $region28: #{tpu_custom_call.1} parent=19 // pred_fallthru
          _
      $region20: #{tpu_custom_call.1} parent=5 // pred_fallthru
        _
      %p226 = scmp.le.s32.totalorder 1, %s16
      %p227 = scmp.lt.s32.totalorder %s16, 3
      %p228 = pnand %p226, %p227
      %p229 = pneg %p228
      // Predicated region
      $region29: #{tpu_custom_call.1} parent=5 // pred_check
        _
      $region30: #{tpu_custom_call.1} parent=5 // pred_check_branch
        %231 = sbr.rel (%p228) target = $region32
      $region31: #{tpu_custom_call.1} parent=5 // pred_region
        %s232 = ssub.s32 %s16, 1
        // Predicated region
        $region33: #{tpu_custom_call.1} parent=31 // pred_check
          %p233 = pneg %p61
        $region34: #{tpu_custom_call.1} parent=31 // pred_check_branch
          %235 = sbr.rel (%p233) target = $region36
        $region35: #{tpu_custom_call.1} parent=31 // pred_region
          %236 = dma.done [#allocation3], 1024
        $region36: #{tpu_custom_call.1} parent=31 // pred_fallthru
          _
        %s237 = sand.u32 %s21, 1
        %s238 = scalar_lea.sflag [#allocation6], %s237
        %s239 = sand.u32 %s76, 1
        %s240 = smul.addr %s239, 256
        %s241 = scalar_lea.vmem [#allocation5], %s240
        // Predicated region
        $region37: #{tpu_custom_call.1} parent=31 // pred_check
          %p242 = pneg %p89
        $region38: #{tpu_custom_call.1} parent=31 // pred_check_branch
          %244 = sbr.rel (%p242) target = $region40
        $region39: #{tpu_custom_call.1} parent=31 // pred_region
          %245 = dma.done %s238, 4096
        $region40: #{tpu_custom_call.1} parent=31 // pred_fallthru
          _
        %s246 = sand.u32 %s21, 1
        %s247 = scalar_lea.sflag [#allocation6], %s246
        %s248 = sand.u32 %s104, 1
        %s249 = smul.addr %s248, 4
        %s250 = scalar_lea.vmem [#allocation7], %s249
        // Predicated region
        $region41: #{tpu_custom_call.1} parent=31 // pred_check
          %p251 = pneg %p117
        $region42: #{tpu_custom_call.1} parent=31 // pred_check_branch
          %253 = sbr.rel (%p251) target = $region44
        $region43: #{tpu_custom_call.1} parent=31 // pred_region
          %254 = dma.done %s247, 64
        $region44: #{tpu_custom_call.1} parent=31 // pred_fallthru
          _
        %p255 = pneg %p61
        %p256 = pneg %p58
        %s257 = sand.u32 %s21, 1
        %s258 = scalar_lea.sflag [#allocation6], %s257
        %s259 = sand.u32 %s76, 1
        %s260 = smul.addr %s259, 256
        %s261 = scalar_lea.vmem [#allocation5], %s260
        %p262 = pneg %p89
        %p263 = pneg %p86
        %s264 = sand.u32 %s21, 1
        %s265 = scalar_lea.sflag [#allocation6], %s264
        %s266 = sand.u32 %s104, 1
        %s267 = smul.addr %s266, 4
        %s268 = scalar_lea.vmem [#allocation7], %s267
        %p269 = pneg %p117
        %p270 = pneg %p114
        %p271 = pneg %p147
        %p272 = pneg %p144
        %s273 = sand.u32 %s134, 1
        %s274 = scalar_lea.sflag [#allocation4], %s273
        %s275 = sand.u32 %s134, 1
        %s276 = smul.addr %s275, 512
        %s277 = scalar_lea.vmem [#allocation8], %s276
        %s278 = smul.u32 16, %s27
        %s279 = smul.u32 4, %s28
        %s280 = smul.u32 4, %s28
        %s281 = smul.u32 16, %s27
        %s282 = smul.u32 4, %s28
        %v284 = vld [vmem:[#allocation2] sm:$0xf]
        %v285 = vld [vmem:[#allocation2 + $0x4] sm:$0xf]
        %v286 = vld [vmem:[#allocation2 + $0x8] sm:$0xf]
        %v287 = vld [vmem:[#allocation2 + $0xc] sm:$0xf]
        %v288 = vld [vmem:[#allocation2 + $0x10] sm:$0xf]
        %v289 = vld [vmem:[#allocation2 + $0x14] sm:$0xf]
        %v290 = vld [vmem:[#allocation2 + $0x18] sm:$0xf]
        %v291 = vld [vmem:[#allocation2 + $0x1c] sm:$0xf]
        %v292 = vld [vmem:[#allocation2 + $0x20] sm:$0xf]
        %v293 = vld [vmem:[#allocation2 + $0x24] sm:$0xf]
        %v294 = vld [vmem:[#allocation2 + $0x28] sm:$0xf]
        %v295 = vld [vmem:[#allocation2 + $0x2c] sm:$0xf]
        %v296 = vld [vmem:[#allocation2 + $0x30] sm:$0xf]
        %v297 = vld [vmem:[#allocation2 + $0x34] sm:$0xf]
        %v298 = vld [vmem:[#allocation2 + $0x38] sm:$0xf]
        %v299 = vld [vmem:[#allocation2 + $0x3c] sm:$0xf]
        %v300 = vld [vmem:[%s241] sm:$0xff]
        %v301 = vld [vmem:[%s241 + $0x8] sm:$0xff]
        %v302 = vld [vmem:[%s241 + $0x10] sm:$0xff]
        %v303 = vld [vmem:[%s241 + $0x18] sm:$0xff]
        %v304 = vld [vmem:[%s241 + $0x20] sm:$0xff]
        %v305 = vld [vmem:[%s241 + $0x28] sm:$0xff]
        %v306 = vld [vmem:[%s241 + $0x30] sm:$0xff]
        %v307 = vld [vmem:[%s241 + $0x38] sm:$0xff]
        %v308 = vld [vmem:[%s241 + $0x40] sm:$0xff]
        %v309 = vld [vmem:[%s241 + $0x48] sm:$0xff]
        %v310 = vld [vmem:[%s241 + $0x50] sm:$0xff]
        %v311 = vld [vmem:[%s241 + $0x58] sm:$0xff]
        %v312 = vld [vmem:[%s241 + $0x60] sm:$0xff]
        %v313 = vld [vmem:[%s241 + $0x68] sm:$0xff]
        %v314 = vld [vmem:[%s241 + $0x70] sm:$0xff]
        %v315 = vld [vmem:[%s241 + $0x78] sm:$0xff]
        %v316 = vld [vmem:[%s241 + $0x80] sm:$0xff]
        %v317 = vld [vmem:[%s241 + $0x88] sm:$0xff]
        %v318 = vld [vmem:[%s241 + $0x90] sm:$0xff]
        %v319 = vld [vmem:[%s241 + $0x98] sm:$0xff]
        %v320 = vld [vmem:[%s241 + $0xa0] sm:$0xff]
        %v321 = vld [vmem:[%s241 + $0xa8] sm:$0xff]
        %v322 = vld [vmem:[%s241 + $0xb0] sm:$0xff]
        %v323 = vld [vmem:[%s241 + $0xb8] sm:$0xff]
        %v324 = vld [vmem:[%s241 + $0xc0] sm:$0xff]
        %v325 = vld [vmem:[%s241 + $0xc8] sm:$0xff]
        %v326 = vld [vmem:[%s241 + $0xd0] sm:$0xff]
        %v327 = vld [vmem:[%s241 + $0xd8] sm:$0xff]
        %v328 = vld [vmem:[%s241 + $0xe0] sm:$0xff]
        %v329 = vld [vmem:[%s241 + $0xe8] sm:$0xff]
        %v330 = vld [vmem:[%s241 + $0xf0] sm:$0xff]
        %v331 = vld [vmem:[%s241 + $0xf8] sm:$0xff]
        %v332 = vld [vmem:[%s250] sm:$0xf]
        %v334 = vlaneseq
        %v335 = vshrl.u32 %v334, 7
        %v336 = vsub.s32 0, %v335
        %v337 = vrot.slane %v332, %v336
        %v338 = vlaneseq
        %v339 = vshrl.u32 %v338, 7
        %v340 = vsub.s32 1, %v339
        %v341 = vrot.slane %v332, %v340
        %v342 = vlaneseq
        %v343 = vshrl.u32 %v342, 7
        %v344 = vsub.s32 2, %v343
        %v345 = vrot.slane %v332, %v344
        %v346 = vlaneseq
        %v347 = vshrl.u32 %v346, 7
        %v348 = vsub.s32 3, %v347
        %v349 = vrot.slane %v332, %v348
        %v370 = vunpack.c.l.b16 %v284
        %v371 = vunpack.c.l.b16 %v285
        %v372 = vunpack.c.l.b16 %v286
        %v373 = vunpack.c.l.b16 %v287
        %v374 = vunpack.c.l.b16 %v288
        %v375 = vunpack.c.l.b16 %v289
        %v376 = vunpack.c.l.b16 %v290
        %v377 = vunpack.c.l.b16 %v291
        %v378 = vunpack.c.l.b16 %v292
        %v379 = vunpack.c.l.b16 %v293
        %v380 = vunpack.c.l.b16 %v294
        %v381 = vunpack.c.l.b16 %v295
        %v382 = vunpack.c.l.b16 %v296
        %v383 = vunpack.c.l.b16 %v297
        %v384 = vunpack.c.l.b16 %v298
        %v385 = vunpack.c.l.b16 %v299
        %v386 = vpack.c.b16 %v371, %v370
        %v387 = vpack.c.b16 %v373, %v372
        %v388 = vpack.c.b16 %v375, %v374
        %v389 = vpack.c.b16 %v377, %v376
        %v390 = vpack.c.b16 %v379, %v378
        %v391 = vpack.c.b16 %v381, %v380
        %v392 = vpack.c.b16 %v383, %v382
        %v393 = vpack.c.b16 %v385, %v384
        %v434 = vunpack.c.l.b16 %v300
        %v435 = vunpack.c.h.b16 %v300
        %v436 = vunpack.c.l.b16 %v301
        %v437 = vunpack.c.h.b16 %v301
        %v438 = vunpack.c.l.b16 %v302
        %v439 = vunpack.c.h.b16 %v302
        %v440 = vunpack.c.l.b16 %v303
        %v441 = vunpack.c.h.b16 %v303
        %v442 = vunpack.c.l.b16 %v304
        %v443 = vunpack.c.h.b16 %v304
        %v444 = vunpack.c.l.b16 %v305
        %v445 = vunpack.c.h.b16 %v305
        %v446 = vunpack.c.l.b16 %v306
        %v447 = vunpack.c.h.b16 %v306
        %v448 = vunpack.c.l.b16 %v307
        %v449 = vunpack.c.h.b16 %v307
        %v450 = vunpack.c.l.b16 %v308
        %v451 = vunpack.c.h.b16 %v308
        %v452 = vunpack.c.l.b16 %v309
        %v453 = vunpack.c.h.b16 %v309
        %v454 = vunpack.c.l.b16 %v310
        %v455 = vunpack.c.h.b16 %v310
        %v456 = vunpack.c.l.b16 %v311
        %v457 = vunpack.c.h.b16 %v311
        %v458 = vunpack.c.l.b16 %v312
        %v459 = vunpack.c.h.b16 %v312
        %v460 = vunpack.c.l.b16 %v313
        %v461 = vunpack.c.h.b16 %v313
        %v462 = vunpack.c.l.b16 %v314
        %v463 = vunpack.c.h.b16 %v314
        %v464 = vunpack.c.l.b16 %v315
        %v465 = vunpack.c.h.b16 %v315
        %v466 = vunpack.c.l.b16 %v316
        %v467 = vunpack.c.h.b16 %v316
        %v468 = vunpack.c.l.b16 %v317
        %v469 = vunpack.c.h.b16 %v317
        %v470 = vunpack.c.l.b16 %v318
        %v471 = vunpack.c.h.b16 %v318
        %v472 = vunpack.c.l.b16 %v319
        %v473 = vunpack.c.h.b16 %v319
        %v474 = vunpack.c.l.b16 %v320
        %v475 = vunpack.c.h.b16 %v320
        %v476 = vunpack.c.l.b16 %v321
        %v477 = vunpack.c.h.b16 %v321
        %v478 = vunpack.c.l.b16 %v322
        %v479 = vunpack.c.h.b16 %v322
        %v480 = vunpack.c.l.b16 %v323
        %v481 = vunpack.c.h.b16 %v323
        %v482 = vunpack.c.l.b16 %v324
        %v483 = vunpack.c.h.b16 %v324
        %v484 = vunpack.c.l.b16 %v325
        %v485 = vunpack.c.h.b16 %v325
        %v486 = vunpack.c.l.b16 %v326
        %v487 = vunpack.c.h.b16 %v326
        %v488 = vunpack.c.l.b16 %v327
        %v489 = vunpack.c.h.b16 %v327
        %v490 = vunpack.c.l.b16 %v328
        %v491 = vunpack.c.h.b16 %v328
        %v492 = vunpack.c.l.b16 %v329
        %v493 = vunpack.c.h.b16 %v329
        %v494 = vunpack.c.l.b16 %v330
        %v495 = vunpack.c.h.b16 %v330
        %v496 = vunpack.c.l.b16 %v331
        %v497 = vunpack.c.h.b16 %v331
        %v498 = vpack.c.b16 %v438, %v434
        %v499 = vpack.c.b16 %v439, %v435
        %v500 = vpack.c.b16 %v440, %v436
        %v501 = vpack.c.b16 %v441, %v437
        %v502 = vpack.c.b16 %v446, %v442
        %v503 = vpack.c.b16 %v447, %v443
        %v504 = vpack.c.b16 %v448, %v444
        %v505 = vpack.c.b16 %v449, %v445
        %v506 = vpack.c.b16 %v454, %v450
        %v507 = vpack.c.b16 %v455, %v451
        %v508 = vpack.c.b16 %v456, %v452
        %v509 = vpack.c.b16 %v457, %v453
        %v510 = vpack.c.b16 %v462, %v458
        %v511 = vpack.c.b16 %v463, %v459
        %v512 = vpack.c.b16 %v464, %v460
        %v513 = vpack.c.b16 %v465, %v461
        %v514 = vpack.c.b16 %v470, %v466
        %v515 = vpack.c.b16 %v471, %v467
        %v516 = vpack.c.b16 %v472, %v468
        %v517 = vpack.c.b16 %v473, %v469
        %v518 = vpack.c.b16 %v478, %v474
        %v519 = vpack.c.b16 %v479, %v475
        %v520 = vpack.c.b16 %v480, %v476
        %v521 = vpack.c.b16 %v481, %v477
        %v522 = vpack.c.b16 %v486, %v482
        %v523 = vpack.c.b16 %v487, %v483
        %v524 = vpack.c.b16 %v488, %v484
        %v525 = vpack.c.b16 %v489, %v485
        %v526 = vpack.c.b16 %v494, %v490
        %v527 = vpack.c.b16 %v495, %v491
        %v528 = vpack.c.b16 %v496, %v492
        %v529 = vpack.c.b16 %v497, %v493
        %562 = vmatprep.subr.bf16.mxu0 %v499
        %563 = vmatpush1.bf16.msra.mxu0 %v498
        %564 = vmatprep.subr.bf16.mxu0 %v503
        %565 = vmatpush1.bf16.msra.mxu0 %v502
        %566 = vmatprep.subr.bf16.mxu0 %v507
        %567 = vmatpush1.bf16.msra.mxu0 %v506
        %568 = vmatprep.subr.bf16.mxu0 %v511
        %569 = vmatpush1.bf16.msra.mxu0 %v510
        %570 = vmatprep.subr.bf16.mxu0 %v515
        %571 = vmatpush1.bf16.msra.mxu0 %v514
        %572 = vmatprep.subr.bf16.mxu0 %v519
        %573 = vmatpush1.bf16.msra.mxu0 %v518
        %574 = vmatprep.subr.bf16.mxu0 %v523
        %575 = vmatpush1.bf16.msra.mxu0 %v522
        %576 = vmatprep.subr.bf16.mxu0 %v527
        %577 = vmatpush1.bf16.msra.mxu0 %v526
        %578 = vmatprep.subr.bf16.mxu0 0
        %579 = vmatpush1.bf16.msra.mxu0 0
        %580 = vmatprep.subr.bf16.mxu0 0
        %581 = vmatpush1.bf16.msra.mxu0 0
        %582 = vmatprep.subr.bf16.mxu0 0
        %583 = vmatpush1.bf16.msra.mxu0 0
        %584 = vmatprep.subr.bf16.mxu0 0
        %585 = vmatpush1.bf16.msra.mxu0 0
        %586 = vmatprep.subr.bf16.mxu0 0
        %587 = vmatpush1.bf16.msra.mxu0 0
        %588 = vmatprep.subr.bf16.mxu0 0
        %589 = vmatpush1.bf16.msra.mxu0 0
        %590 = vmatprep.subr.bf16.mxu0 0
        %591 = vmatpush1.bf16.msra.mxu0 0
        %592 = vmatprep.subr.bf16.mxu0 0
        %593 = vmatpush1.bf16.msra.mxu0 0
        %594 = vmatprep.mubr.bf16.mxu0 0
        %595 = vmatmul.mubr.bf16.gmra.mrb[0].mxu0 %v386
        %v596 = vpop.f32.mrb[0].mxu0
        %v597 = vadd.f32 %v337, %v596
        %v598 = vpop.f32.mrb[0].mxu0
        %v599 = vadd.f32 %v341, %v598
        %v600 = vpop.f32.mrb[0].mxu0
        %v601 = vadd.f32 %v337, %v600
        %v602 = vpop.f32.mrb[0].mxu0
        %v603 = vadd.f32 %v341, %v602
        %604 = vmatprep.mubr.bf16.mxu0 0
        %605 = vmatmul.mubr.bf16.gmra.mrb[0].mxu0 %v387
        %v606 = vpop.f32.mrb[0].mxu0
        %v607 = vadd.f32 %v337, %v606
        %v608 = vpop.f32.mrb[0].mxu0
        %v609 = vadd.f32 %v341, %v608
        %v610 = vpop.f32.mrb[0].mxu0
        %v611 = vadd.f32 %v337, %v610
        %v612 = vpop.f32.mrb[0].mxu0
        %v613 = vadd.f32 %v341, %v612
        %614 = vmatprep.mubr.bf16.mxu0 0
        %615 = vmatmul.mubr.bf16.gmra.mrb[0].mxu0 %v388
        %v616 = vpop.f32.mrb[0].mxu0
        %v617 = vadd.f32 %v337, %v616
        %v618 = vpop.f32.mrb[0].mxu0
        %v619 = vadd.f32 %v341, %v618
        %v620 = vpop.f32.mrb[0].mxu0
        %v621 = vadd.f32 %v337, %v620
        %v622 = vpop.f32.mrb[0].mxu0
        %v623 = vadd.f32 %v341, %v622
        %624 = vmatprep.mubr.bf16.mxu0 0
        %625 = vmatmul.mubr.bf16.gmra.mrb[0].mxu0 %v389
        %v626 = vpop.f32.mrb[0].mxu0
        %v627 = vadd.f32 %v337, %v626
        %v628 = vpop.f32.mrb[0].mxu0
        %v629 = vadd.f32 %v341, %v628
        %v630 = vpop.f32.mrb[0].mxu0
        %v631 = vadd.f32 %v337, %v630
        %v632 = vpop.f32.mrb[0].mxu0
        %v633 = vadd.f32 %v341, %v632
        %634 = vmatprep.mubr.bf16.mxu0 0
        %635 = vmatmul.mubr.bf16.gmra.mrb[0].mxu0 %v390
        %v636 = vpop.f32.mrb[0].mxu0
        %v637 = vadd.f32 %v337, %v636
        %v638 = vpop.f32.mrb[0].mxu0
        %v639 = vadd.f32 %v341, %v638
        %v640 = vpop.f32.mrb[0].mxu0
        %v641 = vadd.f32 %v337, %v640
        %v642 = vpop.f32.mrb[0].mxu0
        %v643 = vadd.f32 %v341, %v642
        %644 = vmatprep.mubr.bf16.mxu0 0
        %645 = vmatmul.mubr.bf16.gmra.mrb[0].mxu0 %v391
        %v646 = vpop.f32.mrb[0].mxu0
        %v647 = vadd.f32 %v337, %v646
        %v648 = vpop.f32.mrb[0].mxu0
        %v649 = vadd.f32 %v341, %v648
        %v650 = vpop.f32.mrb[0].mxu0
        %v651 = vadd.f32 %v337, %v650
        %v652 = vpop.f32.mrb[0].mxu0
        %v653 = vadd.f32 %v341, %v652
        %654 = vmatprep.mubr.bf16.mxu0 0
        %655 = vmatmul.mubr.bf16.gmra.mrb[0].mxu0 %v392
        %v656 = vpop.f32.mrb[0].mxu0
        %v657 = vadd.f32 %v337, %v656
        %v658 = vpop.f32.mrb[0].mxu0
        %v659 = vadd.f32 %v341, %v658
        %v660 = vpop.f32.mrb[0].mxu0
        %v661 = vadd.f32 %v337, %v660
        %v662 = vpop.f32.mrb[0].mxu0
        %v663 = vadd.f32 %v341, %v662
        %664 = vmatprep.mubr.bf16.mxu0 0
        %665 = vmatmul.mubr.bf16.gmra.mrb[0].mxu0 %v393
        %v666 = vpop.f32.mrb[0].mxu0
        %v667 = vadd.f32 %v337, %v666
        %v668 = vpop.f32.mrb[0].mxu0
        %v669 = vadd.f32 %v341, %v668
        %v670 = vpop.f32.mrb[0].mxu0
        %v671 = vadd.f32 %v337, %v670
        %v672 = vpop.f32.mrb[0].mxu0
        %v673 = vadd.f32 %v341, %v672
        %674 = vdwg.mxu0
        %675 = vmatprep.subr.bf16.mxu0 %v501
        %676 = vmatpush1.bf16.msra.mxu0 %v500
        %677 = vmatprep.subr.bf16.mxu0 %v505
        %678 = vmatpush1.bf16.msra.mxu0 %v504
        %679 = vmatprep.subr.bf16.mxu0 %v509
        %680 = vmatpush1.bf16.msra.mxu0 %v508
        %681 = vmatprep.subr.bf16.mxu0 %v513
        %682 = vmatpush1.bf16.msra.mxu0 %v512
        %683 = vmatprep.subr.bf16.mxu0 %v517
        %684 = vmatpush1.bf16.msra.mxu0 %v516
        %685 = vmatprep.subr.bf16.mxu0 %v521
        %686 = vmatpush1.bf16.msra.mxu0 %v520
        %687 = vmatprep.subr.bf16.mxu0 %v525
        %688 = vmatpush1.bf16.msra.mxu0 %v524
        %689 = vmatprep.subr.bf16.mxu0 %v529
        %690 = vmatpush1.bf16.msra.mxu0 %v528
        %691 = vmatprep.subr.bf16.mxu0 0
        %692 = vmatpush1.bf16.msra.mxu0 0
        %693 = vmatprep.subr.bf16.mxu0 0
        %694 = vmatpush1.bf16.msra.mxu0 0
        %695 = vmatprep.subr.bf16.mxu0 0
        %696 = vmatpush1.bf16.msra.mxu0 0
        %697 = vmatprep.subr.bf16.mxu0 0
        %698 = vmatpush1.bf16.msra.mxu0 0
        %699 = vmatprep.subr.bf16.mxu0 0
        %700 = vmatpush1.bf16.msra.mxu0 0
        %701 = vmatprep.subr.bf16.mxu0 0
        %702 = vmatpush1.bf16.msra.mxu0 0
        %703 = vmatprep.subr.bf16.mxu0 0
        %704 = vmatpush1.bf16.msra.mxu0 0
        %705 = vmatprep.subr.bf16.mxu0 0
        %706 = vmatpush1.bf16.msra.mxu0 0
        %707 = vmatprep.mubr.bf16.mxu0 0
        %708 = vmatmul.mubr.bf16.gmra.mrb[0].mxu0 %v386
        %v709 = vpop.f32.mrb[0].mxu0
        %v710 = vadd.f32 %v345, %v709
        %v711 = vpop.f32.mrb[0].mxu0
        %v712 = vadd.f32 %v349, %v711
        %v713 = vpop.f32.mrb[0].mxu0
        %v714 = vadd.f32 %v345, %v713
        %v715 = vpop.f32.mrb[0].mxu0
        %v716 = vadd.f32 %v349, %v715
        %717 = vmatprep.mubr.bf16.mxu0 0
        %718 = vmatmul.mubr.bf16.gmra.mrb[0].mxu0 %v387
        %v719 = vpop.f32.mrb[0].mxu0
        %v720 = vadd.f32 %v345, %v719
        %v721 = vpop.f32.mrb[0].mxu0
        %v722 = vadd.f32 %v349, %v721
        %v723 = vpop.f32.mrb[0].mxu0
        %v724 = vadd.f32 %v345, %v723
        %v725 = vpop.f32.mrb[0].mxu0
        %v726 = vadd.f32 %v349, %v725
        %727 = vmatprep.mubr.bf16.mxu0 0
        %728 = vmatmul.mubr.bf16.gmra.mrb[0].mxu0 %v388
        %v729 = vpop.f32.mrb[0].mxu0
        %v730 = vadd.f32 %v345, %v729
        %v731 = vpop.f32.mrb[0].mxu0
        %v732 = vadd.f32 %v349, %v731
        %v733 = vpop.f32.mrb[0].mxu0
        %v734 = vadd.f32 %v345, %v733
        %v735 = vpop.f32.mrb[0].mxu0
        %v736 = vadd.f32 %v349, %v735
        %737 = vmatprep.mubr.bf16.mxu0 0
        %738 = vmatmul.mubr.bf16.gmra.mrb[0].mxu0 %v389
        %v739 = vpop.f32.mrb[0].mxu0
        %v740 = vadd.f32 %v345, %v739
        %v741 = vpop.f32.mrb[0].mxu0
        %v742 = vadd.f32 %v349, %v741
        %v743 = vpop.f32.mrb[0].mxu0
        %v744 = vadd.f32 %v345, %v743
        %v745 = vpop.f32.mrb[0].mxu0
        %v746 = vadd.f32 %v349, %v745
        %747 = vmatprep.mubr.bf16.mxu0 0
        %748 = vmatmul.mubr.bf16.gmra.mrb[0].mxu0 %v390
        %v749 = vpop.f32.mrb[0].mxu0
        %v750 = vadd.f32 %v345, %v749
        %v751 = vpop.f32.mrb[0].mxu0
        %v752 = vadd.f32 %v349, %v751
        %v753 = vpop.f32.mrb[0].mxu0
        %v754 = vadd.f32 %v345, %v753
        %v755 = vpop.f32.mrb[0].mxu0
        %v756 = vadd.f32 %v349, %v755
        %757 = vmatprep.mubr.bf16.mxu0 0
        %758 = vmatmul.mubr.bf16.gmra.mrb[0].mxu0 %v391
        %v759 = vpop.f32.mrb[0].mxu0
        %v760 = vadd.f32 %v345, %v759
        %v761 = vpop.f32.mrb[0].mxu0
        %v762 = vadd.f32 %v349, %v761
        %v763 = vpop.f32.mrb[0].mxu0
        %v764 = vadd.f32 %v345, %v763
        %v765 = vpop.f32.mrb[0].mxu0
        %v766 = vadd.f32 %v349, %v765
        %767 = vmatprep.mubr.bf16.mxu0 0
        %768 = vmatmul.mubr.bf16.gmra.mrb[0].mxu0 %v392
        %v769 = vpop.f32.mrb[0].mxu0
        %v770 = vadd.f32 %v345, %v769
        %v771 = vpop.f32.mrb[0].mxu0
        %v772 = vadd.f32 %v349, %v771
        %v773 = vpop.f32.mrb[0].mxu0
        %v774 = vadd.f32 %v345, %v773
        %v775 = vpop.f32.mrb[0].mxu0
        %v776 = vadd.f32 %v349, %v775
        %777 = vmatprep.mubr.bf16.mxu0 0
        %778 = vmatmul.mubr.bf16.gmra.mrb[0].mxu0 %v393
        %v779 = vpop.f32.mrb[0].mxu0
        %v780 = vadd.f32 %v345, %v779
        %v781 = vpop.f32.mrb[0].mxu0
        %v782 = vadd.f32 %v349, %v781
        %v783 = vpop.f32.mrb[0].mxu0
        %v784 = vadd.f32 %v345, %v783
        %v785 = vpop.f32.mrb[0].mxu0
        %v786 = vadd.f32 %v349, %v785
        %787 = vdwg.mxu0
        %788 = vst [vmem:[%s277] sm:$0xff] %v597
        %789 = vst [vmem:[%s277 + $0x8] sm:$0xff] %v599
        %790 = vst [vmem:[%s277 + $0x10] sm:$0xff] %v710
        %791 = vst [vmem:[%s277 + $0x18] sm:$0xff] %v712
        %792 = vst [vmem:[%s277 + $0x20] sm:$0xff] %v601
        %793 = vst [vmem:[%s277 + $0x28] sm:$0xff] %v603
        %794 = vst [vmem:[%s277 + $0x30] sm:$0xff] %v714
        %795 = vst [vmem:[%s277 + $0x38] sm:$0xff] %v716
        %796 = vst [vmem:[%s277 + $0x40] sm:$0xff] %v607
        %797 = vst [vmem:[%s277 + $0x48] sm:$0xff] %v609
        %798 = vst [vmem:[%s277 + $0x50] sm:$0xff] %v720
        %799 = vst [vmem:[%s277 + $0x58] sm:$0xff] %v722
        %800 = vst [vmem:[%s277 + $0x60] sm:$0xff] %v611
        %801 = vst [vmem:[%s277 + $0x68] sm:$0xff] %v613
        %802 = vst [vmem:[%s277 + $0x70] sm:$0xff] %v724
        %803 = vst [vmem:[%s277 + $0x78] sm:$0xff] %v726
        %804 = vst [vmem:[%s277 + $0x80] sm:$0xff] %v617
        %805 = vst [vmem:[%s277 + $0x88] sm:$0xff] %v619
        %806 = vst [vmem:[%s277 + $0x90] sm:$0xff] %v730
        %807 = vst [vmem:[%s277 + $0x98] sm:$0xff] %v732
        %808 = vst [vmem:[%s277 + $0xa0] sm:$0xff] %v621
        %809 = vst [vmem:[%s277 + $0xa8] sm:$0xff] %v623
        %810 = vst [vmem:[%s277 + $0xb0] sm:$0xff] %v734
        %811 = vst [vmem:[%s277 + $0xb8] sm:$0xff] %v736
        %812 = vst [vmem:[%s277 + $0xc0] sm:$0xff] %v627
        %813 = vst [vmem:[%s277 + $0xc8] sm:$0xff] %v629
        %814 = vst [vmem:[%s277 + $0xd0] sm:$0xff] %v740
        %815 = vst [vmem:[%s277 + $0xd8] sm:$0xff] %v742
        %816 = vst [vmem:[%s277 + $0xe0] sm:$0xff] %v631
        %817 = vst [vmem:[%s277 + $0xe8] sm:$0xff] %v633
        %818 = vst [vmem:[%s277 + $0xf0] sm:$0xff] %v744
        %819 = vst [vmem:[%s277 + $0xf8] sm:$0xff] %v746
        %820 = vst [vmem:[%s277 + $0x100] sm:$0xff] %v637
        %821 = vst [vmem:[%s277 + $0x108] sm:$0xff] %v639
        %822 = vst [vmem:[%s277 + $0x110] sm:$0xff] %v750
        %823 = vst [vmem:[%s277 + $0x118] sm:$0xff] %v752
        %824 = vst [vmem:[%s277 + $0x120] sm:$0xff] %v641
        %825 = vst [vmem:[%s277 + $0x128] sm:$0xff] %v643
        %826 = vst [vmem:[%s277 + $0x130] sm:$0xff] %v754
        %827 = vst [vmem:[%s277 + $0x138] sm:$0xff] %v756
        %828 = vst [vmem:[%s277 + $0x140] sm:$0xff] %v647
        %829 = vst [vmem:[%s277 + $0x148] sm:$0xff] %v649
        %830 = vst [vmem:[%s277 + $0x150] sm:$0xff] %v760
        %831 = vst [vmem:[%s277 + $0x158] sm:$0xff] %v762
        %832 = vst [vmem:[%s277 + $0x160] sm:$0xff] %v651
        %833 = vst [vmem:[%s277 + $0x168] sm:$0xff] %v653
        %834 = vst [vmem:[%s277 + $0x170] sm:$0xff] %v764
        %835 = vst [vmem:[%s277 + $0x178] sm:$0xff] %v766
        %836 = vst [vmem:[%s277 + $0x180] sm:$0xff] %v657
        %837 = vst [vmem:[%s277 + $0x188] sm:$0xff] %v659
        %838 = vst [vmem:[%s277 + $0x190] sm:$0xff] %v770
        %839 = vst [vmem:[%s277 + $0x198] sm:$0xff] %v772
        %840 = vst [vmem:[%s277 + $0x1a0] sm:$0xff] %v661
        %841 = vst [vmem:[%s277 + $0x1a8] sm:$0xff] %v663
        %842 = vst [vmem:[%s277 + $0x1b0] sm:$0xff] %v774
        %843 = vst [vmem:[%s277 + $0x1b8] sm:$0xff] %v776
        %844 = vst [vmem:[%s277 + $0x1c0] sm:$0xff] %v667
        %845 = vst [vmem:[%s277 + $0x1c8] sm:$0xff] %v669
        %846 = vst [vmem:[%s277 + $0x1d0] sm:$0xff] %v780
        %847 = vst [vmem:[%s277 + $0x1d8] sm:$0xff] %v782
        %848 = vst [vmem:[%s277 + $0x1e0] sm:$0xff] %v671
        %849 = vst [vmem:[%s277 + $0x1e8] sm:$0xff] %v673
        %850 = vst [vmem:[%s277 + $0x1f0] sm:$0xff] %v784
        %851 = vst [vmem:[%s277 + $0x1f8] sm:$0xff] %v786
        %s852 = sand.u32 %s134, 1
        %s853 = scalar_lea.sflag [#allocation4], %s852
        %s854 = sand.u32 %s134, 1
        %s855 = smul.addr %s854, 512
        %s856 = scalar_lea.vmem [#allocation8], %s855
        // Predicated region
        $region45: #{tpu_custom_call.1} parent=31 // pred_check
          %p857 = pneg %p144
        $region46: #{tpu_custom_call.1} parent=31 // pred_check_branch
          %859 = sbr.rel (%p857) target = $region48
        $region47: #{tpu_custom_call.1} parent=31 // pred_region
          %s860 = smul.u32 16, %s27
          %s861 = smul.u32 4, %s28
          %s863 = ssub.s32 8192, 8192
          %864 = vsyncadd %s853, %s863
          %s865 = smul.addr %s860, 4
          %s866 = sadd.s32 %s861, %s865
          %s867 = smul.addr %s26, 64
          %s868 = sadd.s32 %s866, %s867
          %s869 = smul.addr %s868, 128
          %s870 = scalar_lea.hbm %s3, %s869
          %s871 = sshll.u32 %s856, 4
          %s872 = int_to_ptr.vmem [resolvable:$true] %s871
          %877 = dma.vmem_to_hbm [thread:$0]  %s872, 8192, %s870, %s853, 512, 512, 32
        $region48: #{tpu_custom_call.1} parent=31 // pred_fallthru
          _
      $region32: #{tpu_custom_call.1} parent=5 // pred_fallthru
        _
      %p878 = scmp.le.s32.totalorder 2, %s16
      // Predicated region
      $region49: #{tpu_custom_call.1} parent=5 // pred_check
        %p879 = pneg %p878
      $region50: #{tpu_custom_call.1} parent=5 // pred_check_branch
        %881 = sbr.rel (%p879) target = $region52
      $region51: #{tpu_custom_call.1} parent=5 // pred_region
        %s882 = ssub.s32 %s16, 2
        // Predicated region
        $region53: #{tpu_custom_call.1} parent=51 // pred_check
          %p883 = pneg %p150
        $region54: #{tpu_custom_call.1} parent=51 // pred_check_branch
          %885 = sbr.rel (%p883) target = $region56
        $region55: #{tpu_custom_call.1} parent=51 // pred_region
          %s886 = sand.u32 %s135, 1
          %s887 = scalar_lea.sflag [#allocation4], %s886
          %s888 = sand.u32 %s135, 1
          %s889 = smul.addr %s888, 512
          %s890 = scalar_lea.vmem [#allocation8], %s889
          %891 = dma.done %s887, 8192
        $region56: #{tpu_custom_call.1} parent=51 // pred_fallthru
          _
      $region52: #{tpu_custom_call.1} parent=5 // pred_fallthru
        _
    $region6: #{tpu_custom_call.1} parent=1 // loop_footer
      %s20 = sadd.s32 1, %s16
    $region7: #{tpu_custom_call.1} parent=1 // loop_footer_branch
      %15 = sbr.rel target = $region3
    $region8: #{tpu_custom_call.1} parent=1 // loop_exit
      _
    %892 = vsyncpa [#allocation3], 1
    %s893 = scalar_lea.sflag [#allocation3], 1
    %894 = vsyncpa %s893, 1
    %895 = vsyncpa [#allocation6], 1
    %s896 = scalar_lea.sflag [#allocation6], 1
    %897 = vsyncpa %s896, 1
    %898 = vsyncpa [#allocation4], 1
    %s899 = scalar_lea.sflag [#allocation4], 1
    %900 = vsyncpa %s899, 1

</llo_original>
